<compile_context>
chip_gen: v7x
topology: tpu7x:2x2x1
jax: 0.10.0
libtpu: 0.0.40
codegen_flags: <defaults>
</compile_context>

<pallas_src>
import jax
import jax.numpy as jnp
from jax.experimental import pallas as pl
from jax.experimental.pallas import tpu as pltpu


# ---------------------------------------------------------------------------
# Tiling helpers
# ---------------------------------------------------------------------------
# Per-input-tile byte budget. BlockSpec double-buffers each input, so the
# VMEM footprint is ~2x this; 8 MiB stays inside even v5e's 16 MiB default
# scoped VMEM and leaves headroom on v7x (64 MiB physical).
_TILE_BYTES = 4 * 1024 * 1024


def _pick_block(dim, target, align):
    """Largest multiple of `align` that divides `dim` and is <= `target`.

    Falls back to the full dimension when `dim` is not `align`-aligned
    (a full-extent block is always legal for a BlockSpec)."""
    dim = int(dim)
    if dim % align != 0:
        return dim
    t = min(int(target), dim)
    t -= t % align
    if t <= 0:
        return dim
    while dim % t != 0:
        t -= align
    return t


# ---------------------------------------------------------------------------
# Kernels
# ---------------------------------------------------------------------------
def _map_partial_sum_kernel(map_ref, partial_ref):
    """Accumulate sum(map tile) into this row-tile's SMEM partial.

    Grid = (row_tiles ["parallel"], lane_tiles ["arbitrary"]); the output block
    index is constant along the lane-tile axis, so partial_ref stays resident
    and acts as an accumulator."""
    @pl.when(pl.program_id(1) == 0)
    def _init():
        partial_ref[0, 0] = jnp.float32(0.0)

    # Cast to f32 inside the kernel so HBM traffic stays at the native dtype.
    partial_ref[0, 0] += jnp.sum(map_ref[...].astype(jnp.float32))


def _ce_partial_kernel(logits_ref, labels_ref, partial_ref):
    """Sum of per-row cross-entropy terms for one batch tile (mean taken in
    the wrapper)."""
    logits = logits_ref[...].astype(jnp.float32)        # (TM, C)
    labels = labels_ref[...]                            # (TM, 1) int32
    tm, c = logits.shape

    # Numerically-stable log-sum-exp along the class (lane) axis.
    row_max = jnp.max(logits, axis=-1, keepdims=True)                      # (TM, 1)
    lse = jnp.log(jnp.sum(jnp.exp(logits - row_max), axis=-1,
                          keepdims=True)) + row_max                        # (TM, 1)

    # One-hot via compare-against-iota (no gather on TPU).
    class_ids = jax.lax.broadcasted_iota(jnp.int32, (tm, c), 1)            # (TM, C)
    label_logit = jnp.sum(jnp.where(class_ids == labels, logits, 0.0),
                          axis=-1, keepdims=True)                          # (TM, 1)

    partial_ref[0, 0] = jnp.sum(lse - label_logit)


# ---------------------------------------------------------------------------
# Wrapper
# ---------------------------------------------------------------------------
def cps_loss(outputs, labels, map_target, *, alpha, beta, input_size):
    """outputs: (N, C) float logits; labels: (N,) int; map_target: any shape
    with leading batch dim (e.g. (N, 1, H, W)), any float/int dtype."""
    n, c = outputs.shape

    labels2d = labels.reshape(n, 1)
    if labels2d.dtype != jnp.int32:
        labels2d = labels2d.astype(jnp.int32)

    # --- l1 partials: cross entropy, tiled over the batch -------------------
    tm_ce = _pick_block(n, 1024, 8)
    n_ce_tiles = n // tm_ce
    ce_partials = pl.pallas_call(
        _ce_partial_kernel,
        out_shape=jax.ShapeDtypeStruct((n_ce_tiles, 1), jnp.float32),
        grid_spec=pltpu.PrefetchScalarGridSpec(
            num_scalar_prefetch=0,
            grid=(n_ce_tiles,),
            in_specs=[
                pl.BlockSpec((tm_ce, c), lambda i: (i, 0)),
                pl.BlockSpec((tm_ce, 1), lambda i: (i, 0)),
            ],
            out_specs=pl.BlockSpec((1, 1), lambda i: (i, 0),
                                   memory_space=pltpu.MemorySpace.SMEM),
        ),
        compiler_params=pltpu.CompilerParams(
            dimension_semantics=("parallel",)),
    )(outputs, labels2d)

    # --- l2 partials: sum(map_target), streamed in native dtype -------------
    map_flat = map_target.reshape(map_target.shape[0], -1)  # no dtype cast here
    rows, lanes = map_flat.shape
    itemsize = jnp.dtype(map_flat.dtype).itemsize
    budget_elems = max(1, _TILE_BYTES // itemsize)
    tl = _pick_block(lanes, max(128, budget_elems // 8), 128)  # lane-dense last dim
    tm = _pick_block(rows, max(8, budget_elems // tl), 8)
    n_row_tiles = rows // tm
    n_lane_tiles = lanes // tl

    map_partials = pl.pallas_call(
        _map_partial_sum_kernel,
        out_shape=jax.ShapeDtypeStruct((n_row_tiles, 1), jnp.float32),
        grid_spec=pltpu.PrefetchScalarGridSpec(
            num_scalar_prefetch=0,
            grid=(n_row_tiles, n_lane_tiles),
            in_specs=[pl.BlockSpec((tm, tl), lambda i, j: (i, j))],
            out_specs=pl.BlockSpec((1, 1), lambda i, j: (i, 0),
                                   memory_space=pltpu.MemorySpace.SMEM),
        ),
        compiler_params=pltpu.CompilerParams(
            dimension_semantics=("parallel", "arbitrary")),
    )(map_flat)

    # Tiny final reduction / combine in plain JAX.
    l1 = jnp.sum(ce_partials) / jnp.float32(n)
    l2 = jnp.sum(map_partials) / jnp.float32(input_size * input_size / 2.0)
    return jnp.float32(alpha) * l1 + jnp.float32(beta) * l2


# ---------------------------------------------------------------------------
# Pure-JAX reference for verification
# ---------------------------------------------------------------------------
def _reference(outputs, labels, map_target, *, alpha, beta, input_size):
    logits = outputs.astype(jnp.float32)
    logp = jax.nn.log_softmax(logits, axis=-1)
    l1 = -jnp.mean(jnp.take_along_axis(
        logp, labels[:, None].astype(jnp.int32), axis=-1))
    l2 = jnp.sum(map_target.astype(jnp.float32)) / (input_size * input_size / 2.0)
    return alpha * l1 + beta * l2


if __name__ == "__main__":
    key = jax.random.PRNGKey(0)
    k1, k2, k3 = jax.random.split(key, 3)

    N, C = 8, 10                 # CIFAR-10 style logits
    INPUT_SIZE = 16              # spatial size used by the loss denominator
    ALPHA, BETA = 1.0, 0.5

    outputs = jax.random.normal(k1, (N, C), dtype=jnp.float32)
    labels = jax.random.randint(k2, (N,), 0, C, dtype=jnp.int32)
    map_target = jax.random.uniform(k3, (N, 1, INPUT_SIZE, INPUT_SIZE),
                                    dtype=jnp.float32)   # NCHW like PyTorch

    loss = cps_loss(outputs, labels, map_target,
                    alpha=ALPHA, beta=BETA, input_size=INPUT_SIZE)
    loss = jax.block_until_ready(loss)

    ref = _reference(outputs, labels, map_target,
                     alpha=ALPHA, beta=BETA, input_size=INPUT_SIZE)
    assert jnp.allclose(loss, ref, rtol=1e-5, atol=1e-5), (loss, ref)

    print("KERNEL_OK")
</pallas_src>

<mosaic_0001>
module attributes {stable_mosaic.version = 11 : i64} {
  func.func @_ce_partial_kernel(%arg0: i32, %arg1: memref<8x10xf32, #tpu.memory_space<vmem>>, %arg2: memref<8x1xi32, #tpu.memory_space<vmem>>, %arg3: memref<1x1xf32, #tpu.memory_space<smem>>) attributes {dimension_semantics = [#tpu.dimension_semantics<parallel>], iteration_bounds = array<i64: 1>, scalar_prefetch = 0 : i64, scratch_operands = 0 : i64, tpu.core_type = #tpu.core_type<tc>, window_params = [{transform_indices = @transform_0, window_bounds = array<i64: 8, 10>}, {transform_indices = @transform_1, window_bounds = array<i64: 8, 1>}, {transform_indices = @transform_2, window_bounds = array<i64: 1, 1>}]} {
    %c0 = arith.constant 0 : index
    %c0_0 = arith.constant 0 : index
    %0 = vector.load %arg1[%c0, %c0_0] : memref<8x10xf32, #tpu.memory_space<vmem>>, vector<8x10xf32>
    %c0_1 = arith.constant 0 : index
    %c0_2 = arith.constant 0 : index
    %1 = vector.load %arg2[%c0_1, %c0_2] : memref<8x1xi32, #tpu.memory_space<vmem>>, vector<8x1xi32>
    %cst = arith.constant dense<0xFF800000> : vector<8xf32>
    %2 = vector.multi_reduction <maximumf>, %0, %cst [1] : vector<8x10xf32> to vector<8xf32>
    %3 = vector.shape_cast %2 : vector<8xf32> to vector<8x1xf32>
    %4 = vector.broadcast %3 : vector<8x1xf32> to vector<8x10xf32>
    %5 = arith.subf %0, %4 : vector<8x10xf32>
    %6 = math.exp %5 : vector<8x10xf32>
    %cst_3 = arith.constant dense<0.000000e+00> : vector<8xf32>
    %7 = vector.multi_reduction <add>, %6, %cst_3 [1] : vector<8x10xf32> to vector<8xf32>
    %8 = vector.shape_cast %7 : vector<8xf32> to vector<8x1xf32>
    %9 = math.log %8 : vector<8x1xf32>
    %10 = arith.addf %9, %3 : vector<8x1xf32>
    %11 = tpu.iota {dimensions = array<i32: 1>} : vector<8x10xi32>
    %12 = vector.broadcast %1 : vector<8x1xi32> to vector<8x10xi32>
    %13 = arith.cmpi eq, %11, %12 : vector<8x10xi32>
    %cst_4 = arith.constant 0.000000e+00 : f32
    %14 = vector.broadcast %cst_4 : f32 to vector<8x10xf32>
    %15 = arith.select %13, %0, %14 : vector<8x10xi1>, vector<8x10xf32>
    %cst_5 = arith.constant dense<0.000000e+00> : vector<8xf32>
    %16 = vector.multi_reduction <add>, %15, %cst_5 [1] : vector<8x10xf32> to vector<8xf32>
    %17 = vector.shape_cast %16 : vector<8xf32> to vector<8x1xf32>
    %18 = arith.subf %10, %17 : vector<8x1xf32>
    %19 = vector.shape_cast %18 : vector<8x1xf32> to vector<1x8x1xf32>
    %cst_6 = arith.constant dense<0.000000e+00> : vector<1xf32>
    %20 = vector.multi_reduction <add>, %19, %cst_6 [1, 2] : vector<1x8x1xf32> to vector<1xf32>
    %21 = vector.shape_cast %20 : vector<1xf32> to vector<1x1x1xf32>
    %22 = vector.extract %21[0, 0, 0] : f32 from vector<1x1x1xf32>
    %c0_7 = arith.constant 0 : index
    %c0_8 = arith.constant 0 : index
    %23 = memref.load %arg3[%c0_7, %c0_8] : memref<1x1xf32, #tpu.memory_space<smem>>
    memref.store %22, %arg3[%c0_7, %c0_8] : memref<1x1xf32, #tpu.memory_space<smem>>
    return
  }
  func.func @transform_0(%arg0: i32) -> (i32, i32) {
    %c0_i32 = arith.constant 0 : i32
    %c0_i32_0 = arith.constant 0 : i32
    return %arg0, %c0_i32 : i32, i32
  }
  func.func @transform_1(%arg0: i32) -> (i32, i32) {
    %c0_i32 = arith.constant 0 : i32
    %c0_i32_0 = arith.constant 0 : i32
    return %arg0, %c0_i32 : i32, i32
  }
  func.func @transform_2(%arg0: i32) -> (i32, i32) {
    %c0_i32 = arith.constant 0 : i32
    %c0_i32_0 = arith.constant 0 : i32
    return %arg0, %c0_i32 : i32, i32
  }
}

</mosaic_0001>

<llo_original>
// kernel: tpu_custom_call.1
$region0: #{tpu_custom_call.1}
  #allocation0 [shape = 'u32[]', space=smem, size = 0x4, offset = 0x4, fixed_abs, tag = 'smem constant byte address 0x4 - core index']
  #allocation1 [shape = 'u32[144,128]{1,0:T(1,128)}', space=vmem, size = 0x12000, scoped, tag = 'internal scratch']
  %s0 = inlined_call_operand.vmem [shape: f32[8,10], index: 0, kind: input, shape index: {}]
  %s1 = inlined_call_operand.vmem [shape: s32[8,1], index: 1, kind: input, shape index: {}]
  %s2 = inlined_call_operand.hbm [shape: f32[1,1], index: 2, kind: output, shape index: {}]
  %s3 = sld [smem:[#allocation0]]
  $region18: #{tpu_custom_call.1} parent=0
    _
  %s5 = ssub.s32 1, %s3
  %s6 = scalar_select 0, %s5, %s3
  $region1: #{tpu_custom_call.1} parent=0
    #allocation2 [shape = 'u8[512]{0}', space=smem, size = 0x200, scoped, tag = 'output window, operand 0, single buffered']
    #allocation3 [shape = 's32[1]{0}', space=sflag, size = 0x4, scoped, tag = 'scoped memory for tpu_custom_call.1']
    %7 = vsyncpa [#allocation3], 0
    // Predicated region
    $region2: #{tpu_custom_call.1} parent=1 // pred_check
      _
    $region3: #{tpu_custom_call.1} parent=1 // pred_check_branch
      %9 = sbr.rel (0) target = $region5
    $region4: #{tpu_custom_call.1} parent=1 // pred_region
      _
    $region5: #{tpu_custom_call.1} parent=1 // pred_fallthru
      _
    // Predicated region
    $region6: #{tpu_custom_call.1} parent=1 // pred_check
      _
    $region7: #{tpu_custom_call.1} parent=1 // pred_check_branch
      %11 = sbr.rel (0) target = $region9
    $region8: #{tpu_custom_call.1} parent=1 // pred_region
      _
    $region9: #{tpu_custom_call.1} parent=1 // pred_fallthru
      _
    %v12 = vld [vmem:[%s0] sm:$0xff]
    %v13 = vld [vmem:[%s1] sm:$0xff]
    %vm14 = vcmask 80896
    %v15 = vsel %vm14, %v12, -inf
    %16 = vmax.xlane.f32.xlu0 %v15
    %v17 = vpop.xlane.xlu0 %16
    %v18 = vsub.f32 %v12, %v17
    %v19 = vmul.f32 %v18, 1.442695
    %v20 = vpow.pop %v19
    %v21 = vsel %vm14, %v20, 0.0
    %22 = vadd.xlane.f32.xlu0 %v21
    %v23 = vpop.xlane.xlu0 %22
    %v24 = vlog2.pop %v23
    %v25 = vmul.f32 %v24, 0.6931472
    %v26 = vadd.f32 %v25, %v17
    %v27 = vlaneseq
    %v28 = vand.u32 %v27, 127
    %29 = vset.pattern.permute.xlu0 0
    %30 = vperm.xlu0 %29, %v13
    %v31 = vpop.permute.xlu0 %30
    %vm32 = vcmp.eq.s32.totalorder %v28, %v31
    %v33 = vsel %vm32, %v12, 0.0
    %v34 = vsel %vm14, %v33, 0.0
    %35 = vadd.xlane.f32.xlu0 %v34
    %v36 = vpop.xlane.xlu0 %35
    %v37 = vsub.f32 %v26, %v36
    %vm38 = vcmask 7168
    %v39 = vsel %vm38, %v37, 0.0
    %40 = vadd.xlane.f32.xlu0 %v39
    %v41 = vpop.xlane.xlu0 %40
    %v42 = vrot.slane %v41, 4
    %v43 = vadd.f32 %v41, %v42
    %v44 = vrot.slane %v43, 2
    %v45 = vadd.f32 %v43, %v44
    %v46 = vrot.slane %v45, 1
    %v47 = vadd.f32 %v45, %v46
    %s48 = vtos %v47
    %s49 = scalar_lea.smem [#allocation2], 0
    %50 = sst [smem:[%s49]] %s48
    // Predicated region
    $region10: #{tpu_custom_call.1} parent=1 // pred_check
      _
    $region11: #{tpu_custom_call.1} parent=1 // pred_check_branch
      %52 = sbr.rel (0) target = $region13
    $region12: #{tpu_custom_call.1} parent=1 // pred_region
      %s54 = ssub.s32 16, 16
      %55 = vsyncadd [#allocation3], %s54
      %58 = dma.smem_to_hbm [#allocation2], 16, %s2, [#allocation3]
    $region13: #{tpu_custom_call.1} parent=1 // pred_fallthru
      _
    // Predicated region
    $region14: #{tpu_custom_call.1} parent=1 // pred_check
      _
    $region15: #{tpu_custom_call.1} parent=1 // pred_check_branch
      %60 = sbr.rel (0) target = $region17
    $region16: #{tpu_custom_call.1} parent=1 // pred_region
      %61 = dma.done [#allocation3], 16
    $region17: #{tpu_custom_call.1} parent=1 // pred_fallthru
      _
    %62 = sfence
    %63 = vsyncpa [#allocation3], 1

</llo_original>
